<compile_context>
chip_gen: v7x
topology: tpu7x:2x2x1
jax: 0.10.0
libtpu: 0.0.40
codegen_flags: <defaults>
</compile_context>

<pallas_src>
import functools

import jax
import jax.numpy as jnp
from jax.experimental import pallas as pl
from jax.experimental.pallas import tpu as pltpu

BN_EPS = 1e-5


def _bn_relu_fused(h, gamma, beta):
    """BatchNorm1d (training mode, biased variance) + ReLU, folded to one FMA + max."""
    mean = jnp.mean(h, axis=0, keepdims=True)
    # One-pass variance, clamped against catastrophic cancellation in f32.
    var = jnp.maximum(jnp.mean(h * h, axis=0, keepdims=True) - mean * mean, 0.0)
    scale = gamma * jax.lax.rsqrt(var + BN_EPS)      # rsqrt -> EUP slot
    shift = beta - mean * scale
    return jnp.maximum(h * scale + shift, 0.0)


def cvae_kernel(xc_ref, eps_ref, w_ref, v_ref, out_ref, *,
                x_dim, latent, h1e, h2e, h1d, h2d, woff):
    """Whole CVAE forward. w_ref / v_ref are packed slabs sliced at static offsets."""
    f32 = jnp.float32

    def wmat(name, rows, cols):
        r0 = woff[name]                              # static Python int -> static slice
        return w_ref[r0:r0 + rows, :cols]

    def vec(idx, cols):
        return v_ref[idx:idx + 1, :cols]             # (1, cols), broadcasts over batch

    def mm(a, w):
        # Cast the activation to the (possibly bf16) weight dtype for the MXU; f32 acc.
        return jnp.dot(a.astype(w.dtype), w, preferred_element_type=f32)

    xc = xc_ref[...]                                 # [x | c], f32
    in_dim = xc.shape[1]
    c_dim = in_dim - x_dim

    # ---------------- encoder ----------------
    h = mm(xc, wmat("we1", in_dim, h1e))             # bias cancelled by BN mean subtraction
    h = _bn_relu_fused(h, vec(0, h1e), vec(1, h1e))

    h = mm(h, wmat("we2", h1e, h2e))
    h = _bn_relu_fused(h, vec(2, h2e), vec(3, h2e))

    mulv = mm(h, wmat("wmulv", h2e, 2 * latent)) + vec(8, 2 * latent)  # [mu | log_var]
    mu = mulv[:, :latent]
    lv = mulv[:, latent:]

    # ---------------- sampling: z = eps * exp(0.5 * log_var) + mu ----------------
    z = eps_ref[...] * jnp.exp(0.5 * lv) + mu

    # ---------------- decoder (wd1 split: no [z|c] lane concat) ----------------
    d = mm(z, wmat("wd1_z", latent, h1d)) + mm(xc[:, x_dim:], wmat("wd1_c", c_dim, h1d))
    d = _bn_relu_fused(d, vec(4, h1d), vec(5, h1d))

    d = mm(d, wmat("wd2", h1d, h2d))
    d = _bn_relu_fused(d, vec(6, h2d), vec(7, h2d))

    recon = mm(d, wmat("wd3", h2d, x_dim)) + vec(9, x_dim)

    # Single lane-dense store: [mu | log_var | recon] (mulv kept contiguous).
    out_ref[...] = jnp.concatenate([mulv, recon], axis=1)


def pack_params(params, x_dim, c_dim, *, matmul_dtype=jnp.float32):
    """Pack all weights into one slab and all small vectors into another.

    Done ONCE outside the jitted step, so the (optional) bf16 cast of the weights is
    persistent rather than a per-call convert.  matmul_dtype=jnp.bfloat16 is the
    recommended setting on v6e/v7x; default f32 is the simple/safe v5e path.
    """
    latent = params["wmu"].shape[1]
    h1e = params["we1"].shape[1]
    h2e = params["we2"].shape[1]
    h1d = params["wd1"].shape[1]
    h2d = params["wd2"].shape[1]

    wd1 = params["wd1"]                               # (latent + c_dim, h1d)
    weights = {
        "we1": params["we1"],
        "we2": params["we2"],
        "wmulv": jnp.concatenate([params["wmu"], params["wlv"]], axis=1),
        "wd1_z": wd1[:latent],
        "wd1_c": wd1[latent:],
        "wd2": params["wd2"],
        "wd3": params["wd3"],
    }
    wlanes = max(w.shape[1] for w in weights.values())
    woff, rows, padded = {}, 0, []
    for name, w in weights.items():
        woff[name] = rows                             # NOTE: offsets 8-aligned at demo dims
        rows += w.shape[0]
        padded.append(jnp.pad(w, ((0, 0), (0, wlanes - w.shape[1]))))
    wslab = jnp.concatenate(padded, axis=0).astype(matmul_dtype)

    vecs = [
        params["ge1"], params["bte1"],
        params["ge2"], params["bte2"],
        params["gd1"], params["btd1"],
        params["gd2"], params["btd2"],
        jnp.concatenate([params["bmu"], params["blv"]], axis=1),
        params["bd3"],
    ]
    vlanes = max(v.shape[1] for v in vecs)
    vslab = jnp.concatenate(
        [jnp.pad(v, ((0, 0), (0, vlanes - v.shape[1]))) for v in vecs], axis=0
    ).astype(jnp.float32)

    dims = dict(x_dim=x_dim, c_dim=c_dim, latent=latent,
                h1e=h1e, h2e=h2e, h1d=h1d, h2d=h2d)
    return {"wslab": wslab, "vslab": vslab, "woff": woff, "dims": dims}


def cvae_forward(x, c, eps, wslab, vslab, *, dims, woff):
    """Whole CVAE forward in one Pallas kernel (all operands fit VMEM easily)."""
    B = x.shape[0]
    x_dim = dims["x_dim"]
    c_dim = dims["c_dim"]
    latent = dims["latent"]
    h1e, h2e, h1d, h2d = dims["h1e"], dims["h2e"], dims["h1d"], dims["h2d"]

    # Fuse torch.cat([x, c], 1) in the wrapper: one data DMA, and the decoder reuses
    # the c lanes of this slab directly (wd1 is split in pack_params).
    xc = jnp.concatenate([x, c], axis=1)

    out_width = 2 * latent + x_dim
    flops = 2 * B * ((x_dim + c_dim) * h1e + h1e * h2e + h2e * 2 * latent
                     + latent * h1d + c_dim * h1d + h1d * h2d + h2d * x_dim)
    transcendentals = B * latent + (h1e + h2e + h1d + h2d)    # exp + per-feature rsqrt
    bytes_accessed = (xc.size * 4 + eps.size * 4
                      + wslab.size * wslab.dtype.itemsize + vslab.size * 4
                      + B * out_width * 4)

    vmem = pl.BlockSpec(memory_space=pltpu.MemorySpace.VMEM)

    out = pl.pallas_call(
        functools.partial(cvae_kernel, x_dim=x_dim, latent=latent,
                          h1e=h1e, h2e=h2e, h1d=h1d, h2d=h2d, woff=woff),
        out_shape=jax.ShapeDtypeStruct((B, out_width), jnp.float32),
        in_specs=[vmem, vmem, vmem, vmem],
        out_specs=vmem,
        cost_estimate=pl.CostEstimate(
            flops=int(flops),
            transcendentals=int(transcendentals),
            bytes_accessed=int(bytes_accessed),
        ),
    )(xc, eps, wslab, vslab)

    mu = out[:, :latent]
    log_var = out[:, latent:2 * latent]
    recon = out[:, 2 * latent:]
    return recon, mu, log_var


# ---------------------------------------------------------------------------
# Pure-JAX reference: exact PyTorch forward math (biases kept, textbook BN formula).
# ---------------------------------------------------------------------------
def _bn_relu_ref(h, gamma, beta):
    mean = jnp.mean(h, axis=0, keepdims=True)
    var = jnp.mean((h - mean) ** 2, axis=0, keepdims=True)
    return jnp.maximum((h - mean) * jax.lax.rsqrt(var + BN_EPS) * gamma + beta, 0.0)


def cvae_reference(x, c, eps, p):
    xc = jnp.concatenate([x, c], axis=1)
    h = xc @ p["we1"] + p["be1"]
    h = _bn_relu_ref(h, p["ge1"], p["bte1"])
    h = h @ p["we2"] + p["be2"]
    h = _bn_relu_ref(h, p["ge2"], p["bte2"])
    mu = h @ p["wmu"] + p["bmu"]
    lv = h @ p["wlv"] + p["blv"]
    z = eps * jnp.exp(0.5 * lv) + mu
    zc = jnp.concatenate([z, c], axis=1)
    d = zc @ p["wd1"] + p["bd1"]
    d = _bn_relu_ref(d, p["gd1"], p["btd1"])
    d = d @ p["wd2"] + p["bd2"]
    d = _bn_relu_ref(d, p["gd2"], p["btd2"])
    recon = d @ p["wd3"] + p["bd3"]
    return recon, mu, lv


def init_params(key, x_dim, c_dim, enc_layers, dec_layers):
    """enc_layers = [x_dim, h1, h2, latent], dec_layers = [latent, h1, h2, x_dim]."""
    def lin(k, fan_in, fan_out):
        kw, kb = jax.random.split(k)
        w = jax.random.normal(kw, (fan_in, fan_out), jnp.float32) * (1.0 / jnp.sqrt(fan_in))
        b = jax.random.normal(kb, (1, fan_out), jnp.float32) * 0.01
        return w, b

    def bn(k, n):
        kg, kb = jax.random.split(k)
        gamma = 1.0 + 0.1 * jax.random.normal(kg, (1, n), jnp.float32)
        beta = 0.1 * jax.random.normal(kb, (1, n), jnp.float32)
        return gamma, beta

    h1_e, h2_e, latent = enc_layers[1], enc_layers[2], enc_layers[3]
    h1_d, h2_d, out_dim = dec_layers[1], dec_layers[2], dec_layers[3]

    keys = jax.random.split(key, 12)
    p = {}
    p["we1"], p["be1"] = lin(keys[0], x_dim + c_dim, h1_e)
    p["ge1"], p["bte1"] = bn(keys[1], h1_e)
    p["we2"], p["be2"] = lin(keys[2], h1_e, h2_e)
    p["ge2"], p["bte2"] = bn(keys[3], h2_e)
    p["wmu"], p["bmu"] = lin(keys[4], h2_e, latent)
    p["wlv"], p["blv"] = lin(keys[5], h2_e, latent)
    p["wd1"], p["bd1"] = lin(keys[6], latent + c_dim, h1_d)
    p["gd1"], p["btd1"] = bn(keys[7], h1_d)
    p["wd2"], p["bd2"] = lin(keys[8], h1_d, h2_d)
    p["gd2"], p["btd2"] = bn(keys[9], h2_d)
    p["wd3"], p["bd3"] = lin(keys[10], h2_d, out_dim)
    return p


if __name__ == "__main__":
    B = 8
    x_dim, c_dim = 32, 8
    enc_layers = [x_dim, 64, 64, 16]   # -> fc1/fc2: Linear(64, 16)
    dec_layers = [16, 64, 64, x_dim]   # latent=16 back to x_dim

    key = jax.random.PRNGKey(0)
    k_x, k_c, k_eps, k_params = jax.random.split(key, 4)

    x = jax.random.normal(k_x, (B, x_dim), jnp.float32)
    c = jax.random.normal(k_c, (B, c_dim), jnp.float32)
    # eps ~ N(0,1) drawn host-side (stands in for torch.randn_like inside sampling()).
    eps = jax.random.normal(k_eps, (B, dec_layers[0]), jnp.float32)

    params = init_params(k_params, x_dim, c_dim, enc_layers, dec_layers)
    r_ref, mu_ref, lv_ref = cvae_reference(x, c, eps, params)

    # ---- f32 MXU-operand path (default; numerically tight vs. the reference) ----
    packed = pack_params(params, x_dim, c_dim, matmul_dtype=jnp.float32)
    fwd_f32 = jax.jit(functools.partial(cvae_forward, dims=packed["dims"], woff=packed["woff"]))
    recon, mu, log_var = jax.block_until_ready(
        fwd_f32(x, c, eps, packed["wslab"], packed["vslab"]))

    assert recon.shape == (B, x_dim)
    assert mu.shape == (B, dec_layers[0]) and log_var.shape == (B, dec_layers[0])
    assert jnp.allclose(recon, r_ref, rtol=1e-3, atol=1e-3)
    assert jnp.allclose(mu, mu_ref, rtol=1e-3, atol=1e-3)
    assert jnp.allclose(log_var, lv_ref, rtol=1e-3, atol=1e-3)

    # ---- bf16 MXU-operand path (persisted bf16 weight slab; recommended on v6e/v7x) ----
    packed_bf16 = pack_params(params, x_dim, c_dim, matmul_dtype=jnp.bfloat16)
    fwd_bf16 = jax.jit(functools.partial(cvae_forward,
                                         dims=packed_bf16["dims"], woff=packed_bf16["woff"]))
    r_b, mu_b, lv_b = jax.block_until_ready(
        fwd_bf16(x, c, eps, packed_bf16["wslab"], packed_bf16["vslab"]))
    assert jnp.all(jnp.isfinite(r_b)) and jnp.all(jnp.isfinite(mu_b)) and jnp.all(jnp.isfinite(lv_b))
    # Loose tolerance: bf16 operand rounding only (accumulation and all BN/exp math stay f32).
    assert jnp.allclose(mu_b, mu_ref, rtol=1e-1, atol=1e-1)
    assert jnp.allclose(lv_b, lv_ref, rtol=1e-1, atol=1e-1)
    assert jnp.allclose(r_b, r_ref, rtol=1e-1, atol=1e-1)

    print("KERNEL_OK")
</pallas_src>

<mosaic_0001>
module attributes {stable_mosaic.version = 11 : i64} {
  func.func @cvae_kernel(%arg0: memref<8x40xf32, #tpu.memory_space<vmem>>, %arg1: memref<8x16xf32, #tpu.memory_space<vmem>>, %arg2: memref<320x64xf32, #tpu.memory_space<vmem>>, %arg3: memref<10x64xf32, #tpu.memory_space<vmem>>, %arg4: memref<8x64xf32, #tpu.memory_space<vmem>>) attributes {dimension_semantics = [], scalar_prefetch = 0 : i64, scratch_operands = 0 : i64, tpu.core_type = #tpu.core_type<tc>} {
    %c0 = arith.constant 0 : index
    %c0_0 = arith.constant 0 : index
    %0 = vector.load %arg0[%c0, %c0_0] : memref<8x40xf32, #tpu.memory_space<vmem>>, vector<8x40xf32>
    %c0_1 = arith.constant 0 : index
    %c0_2 = arith.constant 0 : index
    %1 = vector.load %arg2[%c0_1, %c0_2] : memref<320x64xf32, #tpu.memory_space<vmem>>, vector<40x64xf32>
    %cst = arith.constant dense<0.000000e+00> : vector<8x64xf32>
    %2 = tpu.matmul %0, %1, %cst {dimension_numbers = #tpu.dot_dimension_numbers<[1], [0], [0], [1], [0, 0, 1, 1], [], []>} : vector<8x40xf32>, vector<40x64xf32>, vector<8x64xf32> -> vector<8x64xf32>
    %c0_3 = arith.constant 0 : index
    %c0_4 = arith.constant 0 : index
    %3 = vector.load %arg3[%c0_3, %c0_4] : memref<10x64xf32, #tpu.memory_space<vmem>>, vector<1x64xf32>
    %c1 = arith.constant 1 : index
    %c0_5 = arith.constant 0 : index
    %4 = vector.load %arg3[%c1, %c0_5] : memref<10x64xf32, #tpu.memory_space<vmem>>, vector<1x64xf32>
    %cst_6 = arith.constant dense<0.000000e+00> : vector<64xf32>
    %5 = vector.multi_reduction <add>, %2, %cst_6 [0] : vector<8x64xf32> to vector<64xf32>
    %6 = vector.shape_cast %5 : vector<64xf32> to vector<1x64xf32>
    %cst_7 = arith.constant 8.000000e+00 : f32
    %7 = vector.broadcast %cst_7 : f32 to vector<1x64xf32>
    %8 = arith.divf %6, %7 : vector<1x64xf32>
    %9 = arith.mulf %2, %2 : vector<8x64xf32>
    %cst_8 = arith.constant dense<0.000000e+00> : vector<64xf32>
    %10 = vector.multi_reduction <add>, %9, %cst_8 [0] : vector<8x64xf32> to vector<64xf32>
    %11 = vector.shape_cast %10 : vector<64xf32> to vector<1x64xf32>
    %cst_9 = arith.constant 8.000000e+00 : f32
    %12 = vector.broadcast %cst_9 : f32 to vector<1x64xf32>
    %13 = arith.divf %11, %12 : vector<1x64xf32>
    %14 = arith.mulf %8, %8 : vector<1x64xf32>
    %15 = arith.subf %13, %14 : vector<1x64xf32>
    %cst_10 = arith.constant 0.000000e+00 : f32
    %16 = vector.broadcast %cst_10 : f32 to vector<1x64xf32>
    %17 = arith.maximumf %15, %16 : vector<1x64xf32>
    %cst_11 = arith.constant 9.99999974E-6 : f32
    %18 = vector.broadcast %cst_11 : f32 to vector<1x64xf32>
    %19 = arith.addf %17, %18 : vector<1x64xf32>
    %20 = math.rsqrt %19 : vector<1x64xf32>
    %21 = arith.mulf %3, %20 : vector<1x64xf32>
    %22 = arith.mulf %8, %21 : vector<1x64xf32>
    %23 = arith.subf %4, %22 : vector<1x64xf32>
    %24 = vector.broadcast %21 : vector<1x64xf32> to vector<8x64xf32>
    %25 = arith.mulf %2, %24 : vector<8x64xf32>
    %26 = vector.broadcast %23 : vector<1x64xf32> to vector<8x64xf32>
    %27 = arith.addf %25, %26 : vector<8x64xf32>
    %cst_12 = arith.constant 0.000000e+00 : f32
    %28 = vector.broadcast %cst_12 : f32 to vector<8x64xf32>
    %29 = arith.maximumf %27, %28 : vector<8x64xf32>
    %c40 = arith.constant 40 : index
    %c0_13 = arith.constant 0 : index
    %30 = vector.load %arg2[%c40, %c0_13] : memref<320x64xf32, #tpu.memory_space<vmem>>, vector<64x64xf32>
    %cst_14 = arith.constant dense<0.000000e+00> : vector<8x64xf32>
    %31 = tpu.matmul %29, %30, %cst_14 {dimension_numbers = #tpu.dot_dimension_numbers<[1], [0], [0], [1], [0, 0, 1, 1], [], []>} : vector<8x64xf32>, vector<64x64xf32>, vector<8x64xf32> -> vector<8x64xf32>
    %c2 = arith.constant 2 : index
    %c0_15 = arith.constant 0 : index
    %32 = vector.load %arg3[%c2, %c0_15] : memref<10x64xf32, #tpu.memory_space<vmem>>, vector<1x64xf32>
    %c3 = arith.constant 3 : index
    %c0_16 = arith.constant 0 : index
    %33 = vector.load %arg3[%c3, %c0_16] : memref<10x64xf32, #tpu.memory_space<vmem>>, vector<1x64xf32>
    %cst_17 = arith.constant dense<0.000000e+00> : vector<64xf32>
    %34 = vector.multi_reduction <add>, %31, %cst_17 [0] : vector<8x64xf32> to vector<64xf32>
    %35 = vector.shape_cast %34 : vector<64xf32> to vector<1x64xf32>
    %cst_18 = arith.constant 8.000000e+00 : f32
    %36 = vector.broadcast %cst_18 : f32 to vector<1x64xf32>
    %37 = arith.divf %35, %36 : vector<1x64xf32>
    %38 = arith.mulf %31, %31 : vector<8x64xf32>
    %cst_19 = arith.constant dense<0.000000e+00> : vector<64xf32>
    %39 = vector.multi_reduction <add>, %38, %cst_19 [0] : vector<8x64xf32> to vector<64xf32>
    %40 = vector.shape_cast %39 : vector<64xf32> to vector<1x64xf32>
    %cst_20 = arith.constant 8.000000e+00 : f32
    %41 = vector.broadcast %cst_20 : f32 to vector<1x64xf32>
    %42 = arith.divf %40, %41 : vector<1x64xf32>
    %43 = arith.mulf %37, %37 : vector<1x64xf32>
    %44 = arith.subf %42, %43 : vector<1x64xf32>
    %cst_21 = arith.constant 0.000000e+00 : f32
    %45 = vector.broadcast %cst_21 : f32 to vector<1x64xf32>
    %46 = arith.maximumf %44, %45 : vector<1x64xf32>
    %cst_22 = arith.constant 9.99999974E-6 : f32
    %47 = vector.broadcast %cst_22 : f32 to vector<1x64xf32>
    %48 = arith.addf %46, %47 : vector<1x64xf32>
    %49 = math.rsqrt %48 : vector<1x64xf32>
    %50 = arith.mulf %32, %49 : vector<1x64xf32>
    %51 = arith.mulf %37, %50 : vector<1x64xf32>
    %52 = arith.subf %33, %51 : vector<1x64xf32>
    %53 = vector.broadcast %50 : vector<1x64xf32> to vector<8x64xf32>
    %54 = arith.mulf %31, %53 : vector<8x64xf32>
    %55 = vector.broadcast %52 : vector<1x64xf32> to vector<8x64xf32>
    %56 = arith.addf %54, %55 : vector<8x64xf32>
    %cst_23 = arith.constant 0.000000e+00 : f32
    %57 = vector.broadcast %cst_23 : f32 to vector<8x64xf32>
    %58 = arith.maximumf %56, %57 : vector<8x64xf32>
    %c104 = arith.constant 104 : index
    %c0_24 = arith.constant 0 : index
    %59 = vector.load %arg2[%c104, %c0_24] : memref<320x64xf32, #tpu.memory_space<vmem>>, vector<64x32xf32>
    %cst_25 = arith.constant dense<0.000000e+00> : vector<8x32xf32>
    %60 = tpu.matmul %58, %59, %cst_25 {dimension_numbers = #tpu.dot_dimension_numbers<[1], [0], [0], [1], [0, 0, 1, 1], [], []>} : vector<8x64xf32>, vector<64x32xf32>, vector<8x32xf32> -> vector<8x32xf32>
    %c8 = arith.constant 8 : index
    %c0_26 = arith.constant 0 : index
    %61 = vector.load %arg3[%c8, %c0_26] : memref<10x64xf32, #tpu.memory_space<vmem>>, vector<1x32xf32>
    %62 = vector.broadcast %61 : vector<1x32xf32> to vector<8x32xf32>
    %63 = arith.addf %60, %62 : vector<8x32xf32>
    %64 = vector.extract_strided_slice %63 {offsets = [0, 0], sizes = [8, 16], strides = [1, 1]} : vector<8x32xf32> to vector<8x16xf32>
    %65 = vector.extract_strided_slice %63 {offsets = [0, 16], sizes = [8, 16], strides = [1, 1]} : vector<8x32xf32> to vector<8x16xf32>
    %c0_27 = arith.constant 0 : index
    %c0_28 = arith.constant 0 : index
    %66 = vector.load %arg1[%c0_27, %c0_28] : memref<8x16xf32, #tpu.memory_space<vmem>>, vector<8x16xf32>
    %cst_29 = arith.constant 5.000000e-01 : f32
    %67 = vector.broadcast %cst_29 : f32 to vector<8x16xf32>
    %68 = arith.mulf %67, %65 : vector<8x16xf32>
    %69 = math.exp %68 : vector<8x16xf32>
    %70 = arith.mulf %66, %69 : vector<8x16xf32>
    %71 = arith.addf %70, %64 : vector<8x16xf32>
    %c168 = arith.constant 168 : index
    %c0_30 = arith.constant 0 : index
    %72 = vector.load %arg2[%c168, %c0_30] : memref<320x64xf32, #tpu.memory_space<vmem>>, vector<16x64xf32>
    %cst_31 = arith.constant dense<0.000000e+00> : vector<8x64xf32>
    %73 = tpu.matmul %71, %72, %cst_31 {dimension_numbers = #tpu.dot_dimension_numbers<[1], [0], [0], [1], [0, 0, 1, 1], [], []>} : vector<8x16xf32>, vector<16x64xf32>, vector<8x64xf32> -> vector<8x64xf32>
    %74 = vector.extract_strided_slice %0 {offsets = [0, 32], sizes = [8, 8], strides = [1, 1]} : vector<8x40xf32> to vector<8x8xf32>
    %c184 = arith.constant 184 : index
    %c0_32 = arith.constant 0 : index
    %75 = vector.load %arg2[%c184, %c0_32] : memref<320x64xf32, #tpu.memory_space<vmem>>, vector<8x64xf32>
    %cst_33 = arith.constant dense<0.000000e+00> : vector<8x64xf32>
    %76 = tpu.matmul %74, %75, %cst_33 {dimension_numbers = #tpu.dot_dimension_numbers<[1], [0], [0], [1], [0, 0, 1, 1], [], []>} : vector<8x8xf32>, vector<8x64xf32>, vector<8x64xf32> -> vector<8x64xf32>
    %77 = arith.addf %73, %76 : vector<8x64xf32>
    %c4 = arith.constant 4 : index
    %c0_34 = arith.constant 0 : index
    %78 = vector.load %arg3[%c4, %c0_34] : memref<10x64xf32, #tpu.memory_space<vmem>>, vector<1x64xf32>
    %c5 = arith.constant 5 : index
    %c0_35 = arith.constant 0 : index
    %79 = vector.load %arg3[%c5, %c0_35] : memref<10x64xf32, #tpu.memory_space<vmem>>, vector<1x64xf32>
    %cst_36 = arith.constant dense<0.000000e+00> : vector<64xf32>
    %80 = vector.multi_reduction <add>, %77, %cst_36 [0] : vector<8x64xf32> to vector<64xf32>
    %81 = vector.shape_cast %80 : vector<64xf32> to vector<1x64xf32>
    %cst_37 = arith.constant 8.000000e+00 : f32
    %82 = vector.broadcast %cst_37 : f32 to vector<1x64xf32>
    %83 = arith.divf %81, %82 : vector<1x64xf32>
    %84 = arith.mulf %77, %77 : vector<8x64xf32>
    %cst_38 = arith.constant dense<0.000000e+00> : vector<64xf32>
    %85 = vector.multi_reduction <add>, %84, %cst_38 [0] : vector<8x64xf32> to vector<64xf32>
    %86 = vector.shape_cast %85 : vector<64xf32> to vector<1x64xf32>
    %cst_39 = arith.constant 8.000000e+00 : f32
    %87 = vector.broadcast %cst_39 : f32 to vector<1x64xf32>
    %88 = arith.divf %86, %87 : vector<1x64xf32>
    %89 = arith.mulf %83, %83 : vector<1x64xf32>
    %90 = arith.subf %88, %89 : vector<1x64xf32>
    %cst_40 = arith.constant 0.000000e+00 : f32
    %91 = vector.broadcast %cst_40 : f32 to vector<1x64xf32>
    %92 = arith.maximumf %90, %91 : vector<1x64xf32>
    %cst_41 = arith.constant 9.99999974E-6 : f32
    %93 = vector.broadcast %cst_41 : f32 to vector<1x64xf32>
    %94 = arith.addf %92, %93 : vector<1x64xf32>
    %95 = math.rsqrt %94 : vector<1x64xf32>
    %96 = arith.mulf %78, %95 : vector<1x64xf32>
    %97 = arith.mulf %83, %96 : vector<1x64xf32>
    %98 = arith.subf %79, %97 : vector<1x64xf32>
    %99 = vector.broadcast %96 : vector<1x64xf32> to vector<8x64xf32>
    %100 = arith.mulf %77, %99 : vector<8x64xf32>
    %101 = vector.broadcast %98 : vector<1x64xf32> to vector<8x64xf32>
    %102 = arith.addf %100, %101 : vector<8x64xf32>
    %cst_42 = arith.constant 0.000000e+00 : f32
    %103 = vector.broadcast %cst_42 : f32 to vector<8x64xf32>
    %104 = arith.maximumf %102, %103 : vector<8x64xf32>
    %c192 = arith.constant 192 : index
    %c0_43 = arith.constant 0 : index
    %105 = vector.load %arg2[%c192, %c0_43] : memref<320x64xf32, #tpu.memory_space<vmem>>, vector<64x64xf32>
    %cst_44 = arith.constant dense<0.000000e+00> : vector<8x64xf32>
    %106 = tpu.matmul %104, %105, %cst_44 {dimension_numbers = #tpu.dot_dimension_numbers<[1], [0], [0], [1], [0, 0, 1, 1], [], []>} : vector<8x64xf32>, vector<64x64xf32>, vector<8x64xf32> -> vector<8x64xf32>
    %c6 = arith.constant 6 : index
    %c0_45 = arith.constant 0 : index
    %107 = vector.load %arg3[%c6, %c0_45] : memref<10x64xf32, #tpu.memory_space<vmem>>, vector<1x64xf32>
    %c7 = arith.constant 7 : index
    %c0_46 = arith.constant 0 : index
    %108 = vector.load %arg3[%c7, %c0_46] : memref<10x64xf32, #tpu.memory_space<vmem>>, vector<1x64xf32>
    %cst_47 = arith.constant dense<0.000000e+00> : vector<64xf32>
    %109 = vector.multi_reduction <add>, %106, %cst_47 [0] : vector<8x64xf32> to vector<64xf32>
    %110 = vector.shape_cast %109 : vector<64xf32> to vector<1x64xf32>
    %cst_48 = arith.constant 8.000000e+00 : f32
    %111 = vector.broadcast %cst_48 : f32 to vector<1x64xf32>
    %112 = arith.divf %110, %111 : vector<1x64xf32>
    %113 = arith.mulf %106, %106 : vector<8x64xf32>
    %cst_49 = arith.constant dense<0.000000e+00> : vector<64xf32>
    %114 = vector.multi_reduction <add>, %113, %cst_49 [0] : vector<8x64xf32> to vector<64xf32>
    %115 = vector.shape_cast %114 : vector<64xf32> to vector<1x64xf32>
    %cst_50 = arith.constant 8.000000e+00 : f32
    %116 = vector.broadcast %cst_50 : f32 to vector<1x64xf32>
    %117 = arith.divf %115, %116 : vector<1x64xf32>
    %118 = arith.mulf %112, %112 : vector<1x64xf32>
    %119 = arith.subf %117, %118 : vector<1x64xf32>
    %cst_51 = arith.constant 0.000000e+00 : f32
    %120 = vector.broadcast %cst_51 : f32 to vector<1x64xf32>
    %121 = arith.maximumf %119, %120 : vector<1x64xf32>
    %cst_52 = arith.constant 9.99999974E-6 : f32
    %122 = vector.broadcast %cst_52 : f32 to vector<1x64xf32>
    %123 = arith.addf %121, %122 : vector<1x64xf32>
    %124 = math.rsqrt %123 : vector<1x64xf32>
    %125 = arith.mulf %107, %124 : vector<1x64xf32>
    %126 = arith.mulf %112, %125 : vector<1x64xf32>
    %127 = arith.subf %108, %126 : vector<1x64xf32>
    %128 = vector.broadcast %125 : vector<1x64xf32> to vector<8x64xf32>
    %129 = arith.mulf %106, %128 : vector<8x64xf32>
    %130 = vector.broadcast %127 : vector<1x64xf32> to vector<8x64xf32>
    %131 = arith.addf %129, %130 : vector<8x64xf32>
    %cst_53 = arith.constant 0.000000e+00 : f32
    %132 = vector.broadcast %cst_53 : f32 to vector<8x64xf32>
    %133 = arith.maximumf %131, %132 : vector<8x64xf32>
    %c256 = arith.constant 256 : index
    %c0_54 = arith.constant 0 : index
    %134 = vector.load %arg2[%c256, %c0_54] : memref<320x64xf32, #tpu.memory_space<vmem>>, vector<64x32xf32>
    %cst_55 = arith.constant dense<0.000000e+00> : vector<8x32xf32>
    %135 = tpu.matmul %133, %134, %cst_55 {dimension_numbers = #tpu.dot_dimension_numbers<[1], [0], [0], [1], [0, 0, 1, 1], [], []>} : vector<8x64xf32>, vector<64x32xf32>, vector<8x32xf32> -> vector<8x32xf32>
    %c9 = arith.constant 9 : index
    %c0_56 = arith.constant 0 : index
    %136 = vector.load %arg3[%c9, %c0_56] : memref<10x64xf32, #tpu.memory_space<vmem>>, vector<1x32xf32>
    %137 = vector.broadcast %136 : vector<1x32xf32> to vector<8x32xf32>
    %138 = arith.addf %135, %137 : vector<8x32xf32>
    %139 = tpu.concatenate %63, %138 in 1 : vector<8x32xf32>, vector<8x32xf32> -> vector<8x64xf32>
    %c0_57 = arith.constant 0 : index
    %c0_58 = arith.constant 0 : index
    %140 = vector.load %arg4[%c0_57, %c0_58] : memref<8x64xf32, #tpu.memory_space<vmem>>, vector<8x64xf32>
    tpu.vector_store %arg4[%c0_57, %c0_58], %139 {strides = array<i32>} : memref<8x64xf32, #tpu.memory_space<vmem>>, vector<8x64xf32>,
    return
  }
}

</mosaic_0001>

<llo_original>
// kernel: cvae_forward.1
$region0: #{cvae_forward.1}
  #allocation0 [shape = 'u32[]', space=smem, size = 0x4, offset = 0x4, fixed_abs, tag = 'smem constant byte address 0x4 - core index']
  #allocation1 [shape = 'u32[144,128]{1,0:T(1,128)}', space=vmem, size = 0x12000, scoped, tag = 'internal scratch']
  %s0 = inlined_call_operand.vmem [shape: f32[8,40], index: 0, kind: input, shape index: {}]
  %s1 = inlined_call_operand.vmem [shape: f32[8,16], index: 1, kind: input, shape index: {}]
  %s2 = inlined_call_operand.vmem [shape: f32[320,64], index: 2, kind: input, shape index: {}]
  %s3 = inlined_call_operand.vmem [shape: f32[10,64], index: 3, kind: input, shape index: {}]
  %s4 = inlined_call_operand.vmem [shape: f32[8,64], index: 4, kind: output, shape index: {}]
  %s5 = sld [smem:[#allocation0]]
  $region26: #{cvae_forward.1} parent=0
    _
  %s7 = ssub.s32 1, %s5
  %s8 = scalar_select 0, %s7, %s5
  // Predicated region
  $region2: #{cvae_forward.1} parent=0 // pred_check
    _
  $region3: #{cvae_forward.1} parent=0 // pred_check_branch
    %10 = sbr.rel (0) target = $region5
  $region4: #{cvae_forward.1} parent=0 // pred_region
    _
  $region5: #{cvae_forward.1} parent=0 // pred_fallthru
    _
  // Predicated region
  $region6: #{cvae_forward.1} parent=0 // pred_check
    _
  $region7: #{cvae_forward.1} parent=0 // pred_check_branch
    %12 = sbr.rel (0) target = $region9
  $region8: #{cvae_forward.1} parent=0 // pred_region
    _
  $region9: #{cvae_forward.1} parent=0 // pred_fallthru
    _
  // Predicated region
  $region10: #{cvae_forward.1} parent=0 // pred_check
    _
  $region11: #{cvae_forward.1} parent=0 // pred_check_branch
    %14 = sbr.rel (0) target = $region13
  $region12: #{cvae_forward.1} parent=0 // pred_region
    _
  $region13: #{cvae_forward.1} parent=0 // pred_fallthru
    _
  // Predicated region
  $region14: #{cvae_forward.1} parent=0 // pred_check
    _
  $region15: #{cvae_forward.1} parent=0 // pred_check_branch
    %16 = sbr.rel (0) target = $region17
  $region16: #{cvae_forward.1} parent=0 // pred_region
    _
  $region17: #{cvae_forward.1} parent=0 // pred_fallthru
    _
  %v17 = vld [vmem:[%s0] sm:$0xff]
  %v18 = vld [vmem:[%s2] sm:$0xff]
  %v19 = vld [vmem:[%s2 + $0x8] sm:$0xff]
  %v20 = vld [vmem:[%s2 + $0x10] sm:$0xff]
  %v21 = vld [vmem:[%s2 + $0x18] sm:$0xff]
  %v22 = vld [vmem:[%s2 + $0x20] sm:$0xff]
  %vm23 = vcmask 326656
  %v25 = vsel %vm23, %v17, 0
  %27 = vmatprep.subr.mxu0 0.0
  %28 = vmatpush1.msra.mxu0 %v18
  %29 = vmatprep.subr.mxu0 0.0
  %30 = vmatpush1.msra.mxu0 %v19
  %31 = vmatprep.subr.mxu0 0.0
  %32 = vmatpush1.msra.mxu0 %v20
  %33 = vmatprep.subr.mxu0 0.0
  %34 = vmatpush1.msra.mxu0 %v21
  %35 = vmatprep.subr.mxu0 0.0
  %36 = vmatpush1.msra.mxu0 %v22
  %37 = vmatprep.subr.mxu0 0.0
  %38 = vmatpush1.msra.mxu0 0.0
  %39 = vmatprep.subr.mxu0 0.0
  %40 = vmatpush1.msra.mxu0 0.0
  %41 = vmatprep.subr.mxu0 0.0
  %42 = vmatpush1.msra.mxu0 0.0
  %43 = vmatprep.subr.mxu0 0.0
  %44 = vmatpush1.msra.mxu0 0.0
  %45 = vmatprep.subr.mxu0 0.0
  %46 = vmatpush1.msra.mxu0 0.0
  %47 = vmatprep.subr.mxu0 0.0
  %48 = vmatpush1.msra.mxu0 0.0
  %49 = vmatprep.subr.mxu0 0.0
  %50 = vmatpush1.msra.mxu0 0.0
  %51 = vmatprep.subr.mxu0 0.0
  %52 = vmatpush1.msra.mxu0 0.0
  %53 = vmatprep.subr.mxu0 0.0
  %54 = vmatpush1.msra.mxu0 0.0
  %55 = vmatprep.subr.mxu0 0.0
  %56 = vmatpush1.msra.mxu0 0.0
  %57 = vmatprep.subr.mxu0 0.0
  %58 = vmatpush1.msra.mxu0 0.0
  %59 = vmatprep.subr.mxu0 0.0
  %60 = vmatpush1.msra.mxu0 0.0
  %61 = vmatprep.subr.mxu0 0.0
  %62 = vmatpush1.msra.mxu0 0.0
  %63 = vmatprep.subr.mxu0 0.0
  %64 = vmatpush1.msra.mxu0 0.0
  %65 = vmatprep.subr.mxu0 0.0
  %66 = vmatpush1.msra.mxu0 0.0
  %67 = vmatprep.subr.mxu0 0.0
  %68 = vmatpush1.msra.mxu0 0.0
  %69 = vmatprep.subr.mxu0 0.0
  %70 = vmatpush1.msra.mxu0 0.0
  %71 = vmatprep.subr.mxu0 0.0
  %72 = vmatpush1.msra.mxu0 0.0
  %73 = vmatprep.subr.mxu0 0.0
  %74 = vmatpush1.msra.mxu0 0.0
  %75 = vmatprep.subr.mxu0 0.0
  %76 = vmatpush1.msra.mxu0 0.0
  %77 = vmatprep.subr.mxu0 0.0
  %78 = vmatpush1.msra.mxu0 0.0
  %79 = vmatprep.subr.mxu0 0.0
  %80 = vmatpush1.msra.mxu0 0.0
  %81 = vmatprep.subr.mxu0 0.0
  %82 = vmatpush1.msra.mxu0 0.0
  %83 = vmatprep.subr.mxu0 0.0
  %84 = vmatpush1.msra.mxu0 0.0
  %85 = vmatprep.subr.mxu0 0.0
  %86 = vmatpush1.msra.mxu0 0.0
  %87 = vmatprep.subr.mxu0 0.0
  %88 = vmatpush1.msra.mxu0 0.0
  %89 = vmatprep.subr.mxu0 0.0
  %90 = vmatpush1.msra.mxu0 0.0
  %91 = vmatprep.mubr.f32.mxu0 0.0
  %92 = vmatmul.mubr.f32.gmra.mrb[0].mxu0 %v25
  %v93 = vpop.f32.mrb[0].mxu0
  %v94 = vadd.f32 0.0, %v93
  %v95 = vpop.f32.mrb[0].mxu0
  %96 = vdwg.mxu0
  %v97 = vld [vmem:[%s3] sm:$0x1]
  %v98 = vld [vmem:[%s3 + $0x1] sm:$0x1]
  %vm99 = vcmask 523264
  %v100 = vsel %vm99, %v94, 0.0
  %v101 = vrot.slane %v100, 4
  %v102 = vadd.f32 %v100, %v101
  %v103 = vrot.slane %v102, 2
  %v104 = vadd.f32 %v102, %v103
  %v105 = vrot.slane %v104, 1
  %v106 = vadd.f32 %v104, %v105
  %v107 = vrcp.pop 8.0
  %v108 = vmul.f32 %v106, %v107
  %v109 = vmul.f32 %v94, %v94
  %v110 = vsel %vm99, %v109, 0.0
  %v111 = vrot.slane %v110, 4
  %v112 = vadd.f32 %v110, %v111
  %v113 = vrot.slane %v112, 2
  %v114 = vadd.f32 %v112, %v113
  %v115 = vrot.slane %v114, 1
  %v116 = vadd.f32 %v114, %v115
  %v117 = vmul.f32 %v116, %v107
  %v118 = vmul.f32 %v108, %v108
  %v119 = vsub.f32 %v117, %v118
  %v120 = vmax.f32 %v119, 0.0
  %v121 = vadd.f32 %v120, 1e-05
  %v122 = vrsqrt.pop %v121
  %v123 = vmul.f32 %v97, %v122
  %v124 = vmul.f32 %v108, %v123
  %v125 = vsub.f32 %v98, %v124
  %v126 = vlaneseq
  %v127 = vshrl.u32 %v126, 7
  %v128 = vsub.s32 0, %v127
  %v129 = vrot.slane %v123, %v128
  %v130 = vmul.f32 %v94, %v129
  %v131 = vlaneseq
  %v132 = vshrl.u32 %v131, 7
  %v133 = vsub.s32 0, %v132
  %v134 = vrot.slane %v125, %v133
  %v135 = vadd.f32 %v130, %v134
  %v136 = vmax.f32 %v135, 0.0
  %v137 = vld [vmem:[%s2 + $0x28] sm:$0xff]
  %v138 = vld [vmem:[%s2 + $0x30] sm:$0xff]
  %v139 = vld [vmem:[%s2 + $0x38] sm:$0xff]
  %v140 = vld [vmem:[%s2 + $0x40] sm:$0xff]
  %v141 = vld [vmem:[%s2 + $0x48] sm:$0xff]
  %v142 = vld [vmem:[%s2 + $0x50] sm:$0xff]
  %v143 = vld [vmem:[%s2 + $0x58] sm:$0xff]
  %v144 = vld [vmem:[%s2 + $0x60] sm:$0xff]
  %v146 = vsel %vm99, %v136, 0
  %148 = vmatprep.subr.mxu0 0.0
  %149 = vmatpush1.msra.mxu0 %v137
  %150 = vmatprep.subr.mxu0 0.0
  %151 = vmatpush1.msra.mxu0 %v138
  %152 = vmatprep.subr.mxu0 0.0
  %153 = vmatpush1.msra.mxu0 %v139
  %154 = vmatprep.subr.mxu0 0.0
  %155 = vmatpush1.msra.mxu0 %v140
  %156 = vmatprep.subr.mxu0 0.0
  %157 = vmatpush1.msra.mxu0 %v141
  %158 = vmatprep.subr.mxu0 0.0
  %159 = vmatpush1.msra.mxu0 %v142
  %160 = vmatprep.subr.mxu0 0.0
  %161 = vmatpush1.msra.mxu0 %v143
  %162 = vmatprep.subr.mxu0 0.0
  %163 = vmatpush1.msra.mxu0 %v144
  %164 = vmatprep.subr.mxu0 0.0
  %165 = vmatpush1.msra.mxu0 0.0
  %166 = vmatprep.subr.mxu0 0.0
  %167 = vmatpush1.msra.mxu0 0.0
  %168 = vmatprep.subr.mxu0 0.0
  %169 = vmatpush1.msra.mxu0 0.0
  %170 = vmatprep.subr.mxu0 0.0
  %171 = vmatpush1.msra.mxu0 0.0
  %172 = vmatprep.subr.mxu0 0.0
  %173 = vmatpush1.msra.mxu0 0.0
  %174 = vmatprep.subr.mxu0 0.0
  %175 = vmatpush1.msra.mxu0 0.0
  %176 = vmatprep.subr.mxu0 0.0
  %177 = vmatpush1.msra.mxu0 0.0
  %178 = vmatprep.subr.mxu0 0.0
  %179 = vmatpush1.msra.mxu0 0.0
  %180 = vmatprep.subr.mxu0 0.0
  %181 = vmatpush1.msra.mxu0 0.0
  %182 = vmatprep.subr.mxu0 0.0
  %183 = vmatpush1.msra.mxu0 0.0
  %184 = vmatprep.subr.mxu0 0.0
  %185 = vmatpush1.msra.mxu0 0.0
  %186 = vmatprep.subr.mxu0 0.0
  %187 = vmatpush1.msra.mxu0 0.0
  %188 = vmatprep.subr.mxu0 0.0
  %189 = vmatpush1.msra.mxu0 0.0
  %190 = vmatprep.subr.mxu0 0.0
  %191 = vmatpush1.msra.mxu0 0.0
  %192 = vmatprep.subr.mxu0 0.0
  %193 = vmatpush1.msra.mxu0 0.0
  %194 = vmatprep.subr.mxu0 0.0
  %195 = vmatpush1.msra.mxu0 0.0
  %196 = vmatprep.subr.mxu0 0.0
  %197 = vmatpush1.msra.mxu0 0.0
  %198 = vmatprep.subr.mxu0 0.0
  %199 = vmatpush1.msra.mxu0 0.0
  %200 = vmatprep.subr.mxu0 0.0
  %201 = vmatpush1.msra.mxu0 0.0
  %202 = vmatprep.subr.mxu0 0.0
  %203 = vmatpush1.msra.mxu0 0.0
  %204 = vmatprep.subr.mxu0 0.0
  %205 = vmatpush1.msra.mxu0 0.0
  %206 = vmatprep.subr.mxu0 0.0
  %207 = vmatpush1.msra.mxu0 0.0
  %208 = vmatprep.subr.mxu0 0.0
  %209 = vmatpush1.msra.mxu0 0.0
  %210 = vmatprep.subr.mxu0 0.0
  %211 = vmatpush1.msra.mxu0 0.0
  %212 = vmatprep.mubr.f32.mxu0 0.0
  %213 = vmatmul.mubr.f32.gmra.mrb[0].mxu0 %v146
  %v214 = vpop.f32.mrb[0].mxu0
  %v215 = vadd.f32 0.0, %v214
  %v216 = vpop.f32.mrb[0].mxu0
  %217 = vdwg.mxu0
  %v218 = vld [vmem:[%s3 + $0x2] sm:$0x1]
  %v219 = vld [vmem:[%s3 + $0x3] sm:$0x1]
  %v220 = vsel %vm99, %v215, 0.0
  %v221 = vrot.slane %v220, 4
  %v222 = vadd.f32 %v220, %v221
  %v223 = vrot.slane %v222, 2
  %v224 = vadd.f32 %v222, %v223
  %v225 = vrot.slane %v224, 1
  %v226 = vadd.f32 %v224, %v225
  %v227 = vmul.f32 %v226, %v107
  %v228 = vmul.f32 %v215, %v215
  %v229 = vsel %vm99, %v228, 0.0
  %v230 = vrot.slane %v229, 4
  %v231 = vadd.f32 %v229, %v230
  %v232 = vrot.slane %v231, 2
  %v233 = vadd.f32 %v231, %v232
  %v234 = vrot.slane %v233, 1
  %v235 = vadd.f32 %v233, %v234
  %v236 = vmul.f32 %v235, %v107
  %v237 = vmul.f32 %v227, %v227
  %v238 = vsub.f32 %v236, %v237
  %v239 = vmax.f32 %v238, 0.0
  %v240 = vadd.f32 %v239, 1e-05
  %v241 = vrsqrt.pop %v240
  %v242 = vmul.f32 %v218, %v241
  %v243 = vmul.f32 %v227, %v242
  %v244 = vsub.f32 %v219, %v243
  %v245 = vlaneseq
  %v246 = vshrl.u32 %v245, 7
  %v247 = vsub.s32 0, %v246
  %v248 = vrot.slane %v242, %v247
  %v249 = vmul.f32 %v215, %v248
  %v250 = vlaneseq
  %v251 = vshrl.u32 %v250, 7
  %v252 = vsub.s32 0, %v251
  %v253 = vrot.slane %v244, %v252
  %v254 = vadd.f32 %v249, %v253
  %v255 = vmax.f32 %v254, 0.0
  %v256 = vld [vmem:[%s2 + $0x68] sm:$0xff]
  %v257 = vld [vmem:[%s2 + $0x70] sm:$0xff]
  %v258 = vld [vmem:[%s2 + $0x78] sm:$0xff]
  %v259 = vld [vmem:[%s2 + $0x80] sm:$0xff]
  %v260 = vld [vmem:[%s2 + $0x88] sm:$0xff]
  %v261 = vld [vmem:[%s2 + $0x90] sm:$0xff]
  %v262 = vld [vmem:[%s2 + $0x98] sm:$0xff]
  %v263 = vld [vmem:[%s2 + $0xa0] sm:$0xff]
  %v264 = vld [vmem:[%s3 + $0x8] sm:$0x1]
  %v265 = vlaneseq
  %v266 = vshrl.u32 %v265, 7
  %v267 = vsub.s32 0, %v266
  %v268 = vrot.slane %v264, %v267
  %v270 = vsel %vm99, %v255, 0
  %272 = vmatprep.subr.mxu0 0.0
  %273 = vmatpush1.msra.mxu0 %v256
  %274 = vmatprep.subr.mxu0 0.0
  %275 = vmatpush1.msra.mxu0 %v257
  %276 = vmatprep.subr.mxu0 0.0
  %277 = vmatpush1.msra.mxu0 %v258
  %278 = vmatprep.subr.mxu0 0.0
  %279 = vmatpush1.msra.mxu0 %v259
  %280 = vmatprep.subr.mxu0 0.0
  %281 = vmatpush1.msra.mxu0 %v260
  %282 = vmatprep.subr.mxu0 0.0
  %283 = vmatpush1.msra.mxu0 %v261
  %284 = vmatprep.subr.mxu0 0.0
  %285 = vmatpush1.msra.mxu0 %v262
  %286 = vmatprep.subr.mxu0 0.0
  %287 = vmatpush1.msra.mxu0 %v263
  %288 = vmatprep.subr.mxu0 0.0
  %289 = vmatpush1.msra.mxu0 0.0
  %290 = vmatprep.subr.mxu0 0.0
  %291 = vmatpush1.msra.mxu0 0.0
  %292 = vmatprep.subr.mxu0 0.0
  %293 = vmatpush1.msra.mxu0 0.0
  %294 = vmatprep.subr.mxu0 0.0
  %295 = vmatpush1.msra.mxu0 0.0
  %296 = vmatprep.subr.mxu0 0.0
  %297 = vmatpush1.msra.mxu0 0.0
  %298 = vmatprep.subr.mxu0 0.0
  %299 = vmatpush1.msra.mxu0 0.0
  %300 = vmatprep.subr.mxu0 0.0
  %301 = vmatpush1.msra.mxu0 0.0
  %302 = vmatprep.subr.mxu0 0.0
  %303 = vmatpush1.msra.mxu0 0.0
  %304 = vmatprep.subr.mxu0 0.0
  %305 = vmatpush1.msra.mxu0 0.0
  %306 = vmatprep.subr.mxu0 0.0
  %307 = vmatpush1.msra.mxu0 0.0
  %308 = vmatprep.subr.mxu0 0.0
  %309 = vmatpush1.msra.mxu0 0.0
  %310 = vmatprep.subr.mxu0 0.0
  %311 = vmatpush1.msra.mxu0 0.0
  %312 = vmatprep.subr.mxu0 0.0
  %313 = vmatpush1.msra.mxu0 0.0
  %314 = vmatprep.subr.mxu0 0.0
  %315 = vmatpush1.msra.mxu0 0.0
  %316 = vmatprep.subr.mxu0 0.0
  %317 = vmatpush1.msra.mxu0 0.0
  %318 = vmatprep.subr.mxu0 0.0
  %319 = vmatpush1.msra.mxu0 0.0
  %320 = vmatprep.subr.mxu0 0.0
  %321 = vmatpush1.msra.mxu0 0.0
  %322 = vmatprep.subr.mxu0 0.0
  %323 = vmatpush1.msra.mxu0 0.0
  %324 = vmatprep.subr.mxu0 0.0
  %325 = vmatpush1.msra.mxu0 0.0
  %326 = vmatprep.subr.mxu0 0.0
  %327 = vmatpush1.msra.mxu0 0.0
  %328 = vmatprep.subr.mxu0 0.0
  %329 = vmatpush1.msra.mxu0 0.0
  %330 = vmatprep.subr.mxu0 0.0
  %331 = vmatpush1.msra.mxu0 0.0
  %332 = vmatprep.subr.mxu0 0.0
  %333 = vmatpush1.msra.mxu0 0.0
  %334 = vmatprep.subr.mxu0 0.0
  %335 = vmatpush1.msra.mxu0 0.0
  %336 = vmatprep.mubr.f32.mxu0 0.0
  %337 = vmatmul.mubr.f32.gmra.mrb[0].mxu0 %v270
  %v338 = vpop.f32.mrb[0].mxu0
  %v339 = vadd.f32 %v268, %v338
  %v340 = vpop.f32.mrb[0].mxu0
  %341 = vdwg.mxu0
  %v342 = vld [vmem:[%s1] sm:$0xff]
  %v343 = vmul.f32 %v339, 0.5
  %v344 = vmul.f32 %v343, 1.442695
  %v345 = vpow.pop %v344
  %347 = vrot.lane.b32.xlu0 %v345, 112
  %v348 = vpop.permute.xlu0 %347
  %v350 = vmul.f32 %v342, %v348
  %v351 = vadd.f32 %v350, %v339
  %v352 = vld [vmem:[%s2 + $0xa8] sm:$0xff]
  %v353 = vld [vmem:[%s2 + $0xb0] sm:$0xff]
  %v354 = vld [vmem:[%s2 + $0xb8] sm:$0xff]
  %355 = vrot.lane.b32.xlu0 %v17, 96
  %v356 = vpop.permute.xlu0 %355
  %vm357 = vcmask 64512
  %v358 = vsel %vm357, %v356, 0
  %360 = vmatprep.subr.mxu0 0.0
  %361 = vmatpush1.msra.mxu0 %v354
  %362 = vmatprep.subr.mxu0 0.0
  %363 = vmatpush1.msra.mxu0 0.0
  %364 = vmatprep.subr.mxu0 0.0
  %365 = vmatpush1.msra.mxu0 0.0
  %366 = vmatprep.subr.mxu0 0.0
  %367 = vmatpush1.msra.mxu0 0.0
  %368 = vmatprep.subr.mxu0 0.0
  %369 = vmatpush1.msra.mxu0 0.0
  %370 = vmatprep.subr.mxu0 0.0
  %371 = vmatpush1.msra.mxu0 0.0
  %372 = vmatprep.subr.mxu0 0.0
  %373 = vmatpush1.msra.mxu0 0.0
  %374 = vmatprep.subr.mxu0 0.0
  %375 = vmatpush1.msra.mxu0 0.0
  %376 = vmatprep.subr.mxu0 0.0
  %377 = vmatpush1.msra.mxu0 0.0
  %378 = vmatprep.subr.mxu0 0.0
  %379 = vmatpush1.msra.mxu0 0.0
  %380 = vmatprep.subr.mxu0 0.0
  %381 = vmatpush1.msra.mxu0 0.0
  %382 = vmatprep.subr.mxu0 0.0
  %383 = vmatpush1.msra.mxu0 0.0
  %384 = vmatprep.subr.mxu0 0.0
  %385 = vmatpush1.msra.mxu0 0.0
  %386 = vmatprep.subr.mxu0 0.0
  %387 = vmatpush1.msra.mxu0 0.0
  %388 = vmatprep.subr.mxu0 0.0
  %389 = vmatpush1.msra.mxu0 0.0
  %390 = vmatprep.subr.mxu0 0.0
  %391 = vmatpush1.msra.mxu0 0.0
  %392 = vmatprep.subr.mxu0 0.0
  %393 = vmatpush1.msra.mxu0 0.0
  %394 = vmatprep.subr.mxu0 0.0
  %395 = vmatpush1.msra.mxu0 0.0
  %396 = vmatprep.subr.mxu0 0.0
  %397 = vmatpush1.msra.mxu0 0.0
  %398 = vmatprep.subr.mxu0 0.0
  %399 = vmatpush1.msra.mxu0 0.0
  %400 = vmatprep.subr.mxu0 0.0
  %401 = vmatpush1.msra.mxu0 0.0
  %402 = vmatprep.subr.mxu0 0.0
  %403 = vmatpush1.msra.mxu0 0.0
  %404 = vmatprep.subr.mxu0 0.0
  %405 = vmatpush1.msra.mxu0 0.0
  %406 = vmatprep.subr.mxu0 0.0
  %407 = vmatpush1.msra.mxu0 0.0
  %408 = vmatprep.subr.mxu0 0.0
  %409 = vmatpush1.msra.mxu0 0.0
  %410 = vmatprep.subr.mxu0 0.0
  %411 = vmatpush1.msra.mxu0 0.0
  %412 = vmatprep.subr.mxu0 0.0
  %413 = vmatpush1.msra.mxu0 0.0
  %414 = vmatprep.subr.mxu0 0.0
  %415 = vmatpush1.msra.mxu0 0.0
  %416 = vmatprep.subr.mxu0 0.0
  %417 = vmatpush1.msra.mxu0 0.0
  %418 = vmatprep.subr.mxu0 0.0
  %419 = vmatpush1.msra.mxu0 0.0
  %420 = vmatprep.subr.mxu0 0.0
  %421 = vmatpush1.msra.mxu0 0.0
  %422 = vmatprep.subr.mxu0 0.0
  %423 = vmatpush1.msra.mxu0 0.0
  %424 = vmatprep.mubr.f32.mxu0 0.0
  %425 = vmatmul.mubr.f32.gmra.mrb[0].mxu0 %v358
  %v426 = vpop.f32.mrb[0].mxu0
  %v427 = vadd.f32 0.0, %v426
  %v428 = vpop.f32.mrb[0].mxu0
  %429 = vdwg.mxu0
  %vm430 = vcmask 130048
  %v432 = vsel %vm430, %v351, 0
  %434 = vmatprep.subr.mxu0 0.0
  %435 = vmatpush1.msra.mxu0 %v352
  %436 = vmatprep.subr.mxu0 0.0
  %437 = vmatpush1.msra.mxu0 %v353
  %438 = vmatprep.subr.mxu0 0.0
  %439 = vmatpush1.msra.mxu0 0.0
  %440 = vmatprep.subr.mxu0 0.0
  %441 = vmatpush1.msra.mxu0 0.0
  %442 = vmatprep.subr.mxu0 0.0
  %443 = vmatpush1.msra.mxu0 0.0
  %444 = vmatprep.subr.mxu0 0.0
  %445 = vmatpush1.msra.mxu0 0.0
  %446 = vmatprep.subr.mxu0 0.0
  %447 = vmatpush1.msra.mxu0 0.0
  %448 = vmatprep.subr.mxu0 0.0
  %449 = vmatpush1.msra.mxu0 0.0
  %450 = vmatprep.subr.mxu0 0.0
  %451 = vmatpush1.msra.mxu0 0.0
  %452 = vmatprep.subr.mxu0 0.0
  %453 = vmatpush1.msra.mxu0 0.0
  %454 = vmatprep.subr.mxu0 0.0
  %455 = vmatpush1.msra.mxu0 0.0
  %456 = vmatprep.subr.mxu0 0.0
  %457 = vmatpush1.msra.mxu0 0.0
  %458 = vmatprep.subr.mxu0 0.0
  %459 = vmatpush1.msra.mxu0 0.0
  %460 = vmatprep.subr.mxu0 0.0
  %461 = vmatpush1.msra.mxu0 0.0
  %462 = vmatprep.subr.mxu0 0.0
  %463 = vmatpush1.msra.mxu0 0.0
  %464 = vmatprep.subr.mxu0 0.0
  %465 = vmatpush1.msra.mxu0 0.0
  %466 = vmatprep.subr.mxu0 0.0
  %467 = vmatpush1.msra.mxu0 0.0
  %468 = vmatprep.subr.mxu0 0.0
  %469 = vmatpush1.msra.mxu0 0.0
  %470 = vmatprep.subr.mxu0 0.0
  %471 = vmatpush1.msra.mxu0 0.0
  %472 = vmatprep.subr.mxu0 0.0
  %473 = vmatpush1.msra.mxu0 0.0
  %474 = vmatprep.subr.mxu0 0.0
  %475 = vmatpush1.msra.mxu0 0.0
  %476 = vmatprep.subr.mxu0 0.0
  %477 = vmatpush1.msra.mxu0 0.0
  %478 = vmatprep.subr.mxu0 0.0
  %479 = vmatpush1.msra.mxu0 0.0
  %480 = vmatprep.subr.mxu0 0.0
  %481 = vmatpush1.msra.mxu0 0.0
  %482 = vmatprep.subr.mxu0 0.0
  %483 = vmatpush1.msra.mxu0 0.0
  %484 = vmatprep.subr.mxu0 0.0
  %485 = vmatpush1.msra.mxu0 0.0
  %486 = vmatprep.subr.mxu0 0.0
  %487 = vmatpush1.msra.mxu0 0.0
  %488 = vmatprep.subr.mxu0 0.0
  %489 = vmatpush1.msra.mxu0 0.0
  %490 = vmatprep.subr.mxu0 0.0
  %491 = vmatpush1.msra.mxu0 0.0
  %492 = vmatprep.subr.mxu0 0.0
  %493 = vmatpush1.msra.mxu0 0.0
  %494 = vmatprep.subr.mxu0 0.0
  %495 = vmatpush1.msra.mxu0 0.0
  %496 = vmatprep.subr.mxu0 0.0
  %497 = vmatpush1.msra.mxu0 0.0
  %498 = vmatprep.mubr.f32.mxu0 0.0
  %499 = vmatmul.mubr.f32.gmra.mrb[0].mxu0 %v432
  %v500 = vpop.f32.mrb[0].mxu0
  %v501 = vadd.f32 %v427, %v500
  %v502 = vpop.f32.mrb[0].mxu0
  %503 = vdwg.mxu0
  %v504 = vld [vmem:[%s3 + $0x4] sm:$0x1]
  %v505 = vld [vmem:[%s3 + $0x5] sm:$0x1]
  %v506 = vsel %vm99, %v501, 0.0
  %v507 = vrot.slane %v506, 4
  %v508 = vadd.f32 %v506, %v507
  %v509 = vrot.slane %v508, 2
  %v510 = vadd.f32 %v508, %v509
  %v511 = vrot.slane %v510, 1
  %v512 = vadd.f32 %v510, %v511
  %v513 = vmul.f32 %v512, %v107
  %v514 = vmul.f32 %v501, %v501
  %v515 = vsel %vm99, %v514, 0.0
  %v516 = vrot.slane %v515, 4
  %v517 = vadd.f32 %v515, %v516
  %v518 = vrot.slane %v517, 2
  %v519 = vadd.f32 %v517, %v518
  %v520 = vrot.slane %v519, 1
  %v521 = vadd.f32 %v519, %v520
  %v522 = vmul.f32 %v521, %v107
  %v523 = vmul.f32 %v513, %v513
  %v524 = vsub.f32 %v522, %v523
  %v525 = vmax.f32 %v524, 0.0
  %v526 = vadd.f32 %v525, 1e-05
  %v527 = vrsqrt.pop %v526
  %v528 = vmul.f32 %v504, %v527
  %v529 = vmul.f32 %v513, %v528
  %v530 = vsub.f32 %v505, %v529
  %v531 = vlaneseq
  %v532 = vshrl.u32 %v531, 7
  %v533 = vsub.s32 0, %v532
  %v534 = vrot.slane %v528, %v533
  %v535 = vmul.f32 %v501, %v534
  %v536 = vlaneseq
  %v537 = vshrl.u32 %v536, 7
  %v538 = vsub.s32 0, %v537
  %v539 = vrot.slane %v530, %v538
  %v540 = vadd.f32 %v535, %v539
  %v541 = vmax.f32 %v540, 0.0
  %v542 = vld [vmem:[%s2 + $0xc0] sm:$0xff]
  %v543 = vld [vmem:[%s2 + $0xc8] sm:$0xff]
  %v544 = vld [vmem:[%s2 + $0xd0] sm:$0xff]
  %v545 = vld [vmem:[%s2 + $0xd8] sm:$0xff]
  %v546 = vld [vmem:[%s2 + $0xe0] sm:$0xff]
  %v547 = vld [vmem:[%s2 + $0xe8] sm:$0xff]
  %v548 = vld [vmem:[%s2 + $0xf0] sm:$0xff]
  %v549 = vld [vmem:[%s2 + $0xf8] sm:$0xff]
  %v551 = vsel %vm99, %v541, 0
  %553 = vmatprep.subr.mxu0 0.0
  %554 = vmatpush1.msra.mxu0 %v542
  %555 = vmatprep.subr.mxu0 0.0
  %556 = vmatpush1.msra.mxu0 %v543
  %557 = vmatprep.subr.mxu0 0.0
  %558 = vmatpush1.msra.mxu0 %v544
  %559 = vmatprep.subr.mxu0 0.0
  %560 = vmatpush1.msra.mxu0 %v545
  %561 = vmatprep.subr.mxu0 0.0
  %562 = vmatpush1.msra.mxu0 %v546
  %563 = vmatprep.subr.mxu0 0.0
  %564 = vmatpush1.msra.mxu0 %v547
  %565 = vmatprep.subr.mxu0 0.0
  %566 = vmatpush1.msra.mxu0 %v548
  %567 = vmatprep.subr.mxu0 0.0
  %568 = vmatpush1.msra.mxu0 %v549
  %569 = vmatprep.subr.mxu0 0.0
  %570 = vmatpush1.msra.mxu0 0.0
  %571 = vmatprep.subr.mxu0 0.0
  %572 = vmatpush1.msra.mxu0 0.0
  %573 = vmatprep.subr.mxu0 0.0
  %574 = vmatpush1.msra.mxu0 0.0
  %575 = vmatprep.subr.mxu0 0.0
  %576 = vmatpush1.msra.mxu0 0.0
  %577 = vmatprep.subr.mxu0 0.0
  %578 = vmatpush1.msra.mxu0 0.0
  %579 = vmatprep.subr.mxu0 0.0
  %580 = vmatpush1.msra.mxu0 0.0
  %581 = vmatprep.subr.mxu0 0.0
  %582 = vmatpush1.msra.mxu0 0.0
  %583 = vmatprep.subr.mxu0 0.0
  %584 = vmatpush1.msra.mxu0 0.0
  %585 = vmatprep.subr.mxu0 0.0
  %586 = vmatpush1.msra.mxu0 0.0
  %587 = vmatprep.subr.mxu0 0.0
  %588 = vmatpush1.msra.mxu0 0.0
  %589 = vmatprep.subr.mxu0 0.0
  %590 = vmatpush1.msra.mxu0 0.0
  %591 = vmatprep.subr.mxu0 0.0
  %592 = vmatpush1.msra.mxu0 0.0
  %593 = vmatprep.subr.mxu0 0.0
  %594 = vmatpush1.msra.mxu0 0.0
  %595 = vmatprep.subr.mxu0 0.0
  %596 = vmatpush1.msra.mxu0 0.0
  %597 = vmatprep.subr.mxu0 0.0
  %598 = vmatpush1.msra.mxu0 0.0
  %599 = vmatprep.subr.mxu0 0.0
  %600 = vmatpush1.msra.mxu0 0.0
  %601 = vmatprep.subr.mxu0 0.0
  %602 = vmatpush1.msra.mxu0 0.0
  %603 = vmatprep.subr.mxu0 0.0
  %604 = vmatpush1.msra.mxu0 0.0
  %605 = vmatprep.subr.mxu0 0.0
  %606 = vmatpush1.msra.mxu0 0.0
  %607 = vmatprep.subr.mxu0 0.0
  %608 = vmatpush1.msra.mxu0 0.0
  %609 = vmatprep.subr.mxu0 0.0
  %610 = vmatpush1.msra.mxu0 0.0
  %611 = vmatprep.subr.mxu0 0.0
  %612 = vmatpush1.msra.mxu0 0.0
  %613 = vmatprep.subr.mxu0 0.0
  %614 = vmatpush1.msra.mxu0 0.0
  %615 = vmatprep.subr.mxu0 0.0
  %616 = vmatpush1.msra.mxu0 0.0
  %617 = vmatprep.mubr.f32.mxu0 0.0
  %618 = vmatmul.mubr.f32.gmra.mrb[0].mxu0 %v551
  %v619 = vpop.f32.mrb[0].mxu0
  %v620 = vadd.f32 0.0, %v619
  %v621 = vpop.f32.mrb[0].mxu0
  %622 = vdwg.mxu0
  %v623 = vld [vmem:[%s3 + $0x6] sm:$0x1]
  %v624 = vld [vmem:[%s3 + $0x7] sm:$0x1]
  %v625 = vsel %vm99, %v620, 0.0
  %v626 = vrot.slane %v625, 4
  %v627 = vadd.f32 %v625, %v626
  %v628 = vrot.slane %v627, 2
  %v629 = vadd.f32 %v627, %v628
  %v630 = vrot.slane %v629, 1
  %v631 = vadd.f32 %v629, %v630
  %v632 = vmul.f32 %v631, %v107
  %v633 = vmul.f32 %v620, %v620
  %v634 = vsel %vm99, %v633, 0.0
  %v635 = vrot.slane %v634, 4
  %v636 = vadd.f32 %v634, %v635
  %v637 = vrot.slane %v636, 2
  %v638 = vadd.f32 %v636, %v637
  %v639 = vrot.slane %v638, 1
  %v640 = vadd.f32 %v638, %v639
  %v641 = vmul.f32 %v640, %v107
  %v642 = vmul.f32 %v632, %v632
  %v643 = vsub.f32 %v641, %v642
  %v644 = vmax.f32 %v643, 0.0
  %v645 = vadd.f32 %v644, 1e-05
  %v646 = vrsqrt.pop %v645
  %v647 = vmul.f32 %v623, %v646
  %v648 = vmul.f32 %v632, %v647
  %v649 = vsub.f32 %v624, %v648
  %v650 = vlaneseq
  %v651 = vshrl.u32 %v650, 7
  %v652 = vsub.s32 0, %v651
  %v653 = vrot.slane %v647, %v652
  %v654 = vmul.f32 %v620, %v653
  %v655 = vlaneseq
  %v656 = vshrl.u32 %v655, 7
  %v657 = vsub.s32 0, %v656
  %v658 = vrot.slane %v649, %v657
  %v659 = vadd.f32 %v654, %v658
  %v660 = vmax.f32 %v659, 0.0
  %v661 = vld [vmem:[%s2 + $0x100] sm:$0xff]
  %v662 = vld [vmem:[%s2 + $0x108] sm:$0xff]
  %v663 = vld [vmem:[%s2 + $0x110] sm:$0xff]
  %v664 = vld [vmem:[%s2 + $0x118] sm:$0xff]
  %v665 = vld [vmem:[%s2 + $0x120] sm:$0xff]
  %v666 = vld [vmem:[%s2 + $0x128] sm:$0xff]
  %v667 = vld [vmem:[%s2 + $0x130] sm:$0xff]
  %v668 = vld [vmem:[%s2 + $0x138] sm:$0xff]
  %v669 = vld [vmem:[%s3 + $0x9] sm:$0x1]
  %v670 = vlaneseq
  %v671 = vshrl.u32 %v670, 7
  %v672 = vsub.s32 0, %v671
  %v673 = vrot.slane %v669, %v672
  %v675 = vsel %vm99, %v660, 0
  %677 = vmatprep.subr.mxu0 0.0
  %678 = vmatpush1.msra.mxu0 %v661
  %679 = vmatprep.subr.mxu0 0.0
  %680 = vmatpush1.msra.mxu0 %v662
  %681 = vmatprep.subr.mxu0 0.0
  %682 = vmatpush1.msra.mxu0 %v663
  %683 = vmatprep.subr.mxu0 0.0
  %684 = vmatpush1.msra.mxu0 %v664
  %685 = vmatprep.subr.mxu0 0.0
  %686 = vmatpush1.msra.mxu0 %v665
  %687 = vmatprep.subr.mxu0 0.0
  %688 = vmatpush1.msra.mxu0 %v666
  %689 = vmatprep.subr.mxu0 0.0
  %690 = vmatpush1.msra.mxu0 %v667
  %691 = vmatprep.subr.mxu0 0.0
  %692 = vmatpush1.msra.mxu0 %v668
  %693 = vmatprep.subr.mxu0 0.0
  %694 = vmatpush1.msra.mxu0 0.0
  %695 = vmatprep.subr.mxu0 0.0
  %696 = vmatpush1.msra.mxu0 0.0
  %697 = vmatprep.subr.mxu0 0.0
  %698 = vmatpush1.msra.mxu0 0.0
  %699 = vmatprep.subr.mxu0 0.0
  %700 = vmatpush1.msra.mxu0 0.0
  %701 = vmatprep.subr.mxu0 0.0
  %702 = vmatpush1.msra.mxu0 0.0
  %703 = vmatprep.subr.mxu0 0.0
  %704 = vmatpush1.msra.mxu0 0.0
  %705 = vmatprep.subr.mxu0 0.0
  %706 = vmatpush1.msra.mxu0 0.0
  %707 = vmatprep.subr.mxu0 0.0
  %708 = vmatpush1.msra.mxu0 0.0
  %709 = vmatprep.subr.mxu0 0.0
  %710 = vmatpush1.msra.mxu0 0.0
  %711 = vmatprep.subr.mxu0 0.0
  %712 = vmatpush1.msra.mxu0 0.0
  %713 = vmatprep.subr.mxu0 0.0
  %714 = vmatpush1.msra.mxu0 0.0
  %715 = vmatprep.subr.mxu0 0.0
  %716 = vmatpush1.msra.mxu0 0.0
  %717 = vmatprep.subr.mxu0 0.0
  %718 = vmatpush1.msra.mxu0 0.0
  %719 = vmatprep.subr.mxu0 0.0
  %720 = vmatpush1.msra.mxu0 0.0
  %721 = vmatprep.subr.mxu0 0.0
  %722 = vmatpush1.msra.mxu0 0.0
  %723 = vmatprep.subr.mxu0 0.0
  %724 = vmatpush1.msra.mxu0 0.0
  %725 = vmatprep.subr.mxu0 0.0
  %726 = vmatpush1.msra.mxu0 0.0
  %727 = vmatprep.subr.mxu0 0.0
  %728 = vmatpush1.msra.mxu0 0.0
  %729 = vmatprep.subr.mxu0 0.0
  %730 = vmatpush1.msra.mxu0 0.0
  %731 = vmatprep.subr.mxu0 0.0
  %732 = vmatpush1.msra.mxu0 0.0
  %733 = vmatprep.subr.mxu0 0.0
  %734 = vmatpush1.msra.mxu0 0.0
  %735 = vmatprep.subr.mxu0 0.0
  %736 = vmatpush1.msra.mxu0 0.0
  %737 = vmatprep.subr.mxu0 0.0
  %738 = vmatpush1.msra.mxu0 0.0
  %739 = vmatprep.subr.mxu0 0.0
  %740 = vmatpush1.msra.mxu0 0.0
  %741 = vmatprep.mubr.f32.mxu0 0.0
  %742 = vmatmul.mubr.f32.gmra.mrb[0].mxu0 %v675
  %v743 = vpop.f32.mrb[0].mxu0
  %v744 = vadd.f32 %v673, %v743
  %v745 = vpop.f32.mrb[0].mxu0
  %746 = vdwg.mxu0
  %748 = vrot.lane.b32.xlu0 %v744, 32
  %v749 = vpop.permute.xlu0 %748
  %vm751 = vcmask 261120
  %v752 = vsel %vm751, %v339, %v749
  %753 = vst.msk [vmem:[%s4] sm:$0xff] %vm99, %v752
  // Predicated region
  $region18: #{cvae_forward.1} parent=0 // pred_check
    _
  $region19: #{cvae_forward.1} parent=0 // pred_check_branch
    %755 = sbr.rel (0) target = $region21
  $region20: #{cvae_forward.1} parent=0 // pred_region
    _
  $region21: #{cvae_forward.1} parent=0 // pred_fallthru
    _
  // Predicated region
  $region22: #{cvae_forward.1} parent=0 // pred_check
    _
  $region23: #{cvae_forward.1} parent=0 // pred_check_branch
    %757 = sbr.rel (0) target = $region25
  $region24: #{cvae_forward.1} parent=0 // pred_region
    _
  $region25: #{cvae_forward.1} parent=0 // pred_fallthru
    _

</llo_original>
